<compile_context>
chip_gen: v7x
topology: tpu7x:2x2x1
jax: 0.10.0
libtpu: 0.0.40
codegen_flags: <defaults>
</compile_context>

<pallas_src>
import jax
import jax.numpy as jnp
from jax.experimental import pallas as pl
from jax.experimental.pallas import tpu as pltpu


def _projector_kernel(x_ref, w_ref, b_ref, o_ref):
    # x_ref: (TB, D) row tile of X        (VMEM, pipelined over the grid)
    # w_ref: (1, D)  weight row           (VMEM, same block index -> fetched once)
    # b_ref: (1,)    bias scalar          (SMEM, f32)
    # o_ref: (TB, 1) output tile
    x = x_ref[...].astype(jnp.float32)
    w = w_ref[...].astype(jnp.float32)           # broadcasts over the TB rows
    y = jnp.sum(x * w, axis=-1, keepdims=True)   # VPU multiply + XLU lane-reduce
    o_ref[...] = (y + b_ref[0]).astype(o_ref.dtype)


def _round_up(n: int, m: int) -> int:
    return ((n + m - 1) // m) * m


def _vmem_capacity_bytes() -> int:
    """Per-TensorCore VMEM (128 MiB on v5e/v6e, 64 MiB on v7x)."""
    try:
        return int(pltpu.get_tpu_info().vmem_capacity_bytes)
    except Exception:
        return 64 << 20  # conservative default = v7x


def _pick_block_rows(batch: int, d: int, x_itemsize: int, out_itemsize: int,
                     vmem_cap: int, requested=None) -> int:
    """Rows per X tile.

    Sized by bytes only (big tiles amortize the ~0.35us per grid step and reach
    the HBM roofline), counting double-buffered X tiles AND the lane-padded
    (TB, 1) output tiles, then constrained so the batch grid has >= 2 steps
    (megacore split on v7x) whenever the batch is non-trivial.
    """
    budget = min(int(vmem_cap * 0.55), 56 << 20)
    # Per output row in VMEM: X row + output row padded to a full 128-lane tile,
    # each double-buffered by the BlockSpec pipeline.
    per_row = 2 * (d * x_itemsize + 128 * out_itemsize)
    rows_max = max(8, (budget // per_row) // 8 * 8)
    rows_max = min(rows_max, _round_up(batch, 8))
    rows_max = max(8, rows_max)

    if requested is not None:
        # Sanitize caller value: multiple of 8, within the VMEM budget.
        return max(8, min(_round_up(int(requested), 8), rows_max))

    rows = rows_max
    if batch > 8:
        # Guarantee at least 2 grid steps so ("parallel",) uses both v7x cores.
        rows = min(rows, _round_up(pl.cdiv(batch, 2), 8))
    rows = max(8, rows)

    # Prefer an even number of grid steps (balanced split across 2 cores).
    nb = pl.cdiv(batch, rows)
    if nb >= 3 and nb % 2 == 1:
        rows_try = max(8, _round_up(pl.cdiv(batch, nb + 1), 8))
        if pl.cdiv(batch, rows_try) % 2 == 0:
            rows = rows_try
    return rows


def _xla_projector(x, weight, bias):
    """Plain XLA fallback for tiny problems (launch overhead dominates)."""
    y = jnp.einsum("bd,od->bo", x.astype(jnp.float32), weight.astype(jnp.float32))
    return (y[:, 0] + bias.astype(jnp.float32)[0]).astype(x.dtype)


def projector_forward(x, weight, bias, *, block_rows=None, prefer_pallas=None):
    """Pallas equivalent of `nn.Linear(D, 1)(x).squeeze(-1)`.

    x:      (B, D)
    weight: (1, D)   -- nn.Linear layout (out_features=1, in_features=D)
    bias:   (1,)
    returns (B,)
    """
    B, D = x.shape
    assert weight.shape == (1, D)
    assert bias.shape == (1,)
    out_dtype = x.dtype

    x_itemsize = jnp.dtype(x.dtype).itemsize
    out_itemsize = jnp.dtype(out_dtype).itemsize

    if prefer_pallas is None:
        # Tiny problems: XLA's fused GEMV is as fast or faster than a kernel
        # launch (lane under-utilization for D < 128, per-step overhead).
        prefer_pallas = (D >= 128) and (B * D * x_itemsize >= (2 << 20))
    if not prefer_pallas:
        return _xla_projector(x, weight, bias)

    vmem_cap = _vmem_capacity_bytes()
    tb = _pick_block_rows(B, D, x_itemsize, out_itemsize, vmem_cap,
                          requested=block_rows)
    num_blocks = pl.cdiv(B, tb)
    # Scoped-VMEM limit: above the tile budget, below physical VMEM on every
    # generation (64 MiB v7x -> 48 MiB; 128 MiB v5e/v6e -> 80 MiB).
    vmem_limit = min(vmem_cap * 3 // 4, 80 << 20)

    bias_f32 = bias.astype(jnp.float32)          # SMEM holds 32-bit scalars

    out = pl.pallas_call(
        _projector_kernel,
        out_shape=jax.ShapeDtypeStruct((B, 1), out_dtype),
        grid=(num_blocks,),
        in_specs=[
            pl.BlockSpec((tb, D), lambda i: (i, 0)),            # X: pipelined tiles
            pl.BlockSpec((1, D), lambda i: (0, 0)),             # weight: resident
            pl.BlockSpec(memory_space=pltpu.MemorySpace.SMEM),  # bias: SMEM scalar
        ],
        out_specs=pl.BlockSpec((tb, 1), lambda i: (i, 0)),      # ragged tail masked
        compiler_params=pltpu.CompilerParams(
            dimension_semantics=("parallel",),   # megacore split of batch on v7x
            vmem_limit_bytes=int(vmem_limit),
        ),
    )(x, weight, bias_f32)
    return out[:, 0]                              # squeeze(-1)


if __name__ == "__main__":
    key = jax.random.PRNGKey(0)
    k_x, k_w, k_b, k_x2, k_w2, k_b2, k_x3 = jax.random.split(key, 7)

    # --- Check 1: small shapes consistent with the module's usage (Pallas path
    # forced so the kernel itself is exercised; auto-dispatch would use XLA).
    batch, input_size = 8, 32
    bound = float(input_size) ** -0.5            # nn.Linear default init range
    w = jax.random.uniform(k_w, (1, input_size), jnp.float32, -bound, bound)
    b = jax.random.uniform(k_b, (1,), jnp.float32, -bound, bound)
    x = jax.random.normal(k_x, (batch, input_size), jnp.float32)

    y = projector_forward(x, w, b, prefer_pallas=True)
    jax.block_until_ready(y)
    y_ref = jnp.sum(x * w, axis=-1) + b[0]
    assert y.shape == (batch,)
    assert jnp.allclose(y, y_ref, atol=1e-5, rtol=1e-5)

    # Auto-dispatch (tiny problem -> XLA fallback) must agree too.
    y_auto = projector_forward(x, w, b)
    jax.block_until_ready(y_auto)
    assert jnp.allclose(y_auto, y_ref, atol=1e-5, rtol=1e-5)

    # --- Check 2: multi-step pipelined batch grid with a ragged last block
    # (200 rows, 64-row tiles -> grid=(4,), last tile has 8 valid rows).
    batch2, input2 = 200, 256
    bound2 = float(input2) ** -0.5
    w2 = jax.random.uniform(k_w2, (1, input2), jnp.float32, -bound2, bound2)
    b2 = jax.random.uniform(k_b2, (1,), jnp.float32, -bound2, bound2)
    x2 = jax.random.normal(k_x2, (batch2, input2), jnp.float32)

    y2 = projector_forward(x2, w2, b2, block_rows=64, prefer_pallas=True)
    jax.block_until_ready(y2)
    y2_ref = jnp.sum(x2 * w2, axis=-1) + b2[0]
    assert y2.shape == (batch2,)
    assert jnp.allclose(y2, y2_ref, atol=1e-4, rtol=1e-4)

    # --- Check 3: bf16 activations (halved HBM bytes) with f32 accumulation.
    batch3 = 96
    x3 = jax.random.normal(k_x3, (batch3, input2), jnp.float32).astype(jnp.bfloat16)
    y3 = projector_forward(x3, w2, b2, prefer_pallas=True)
    jax.block_until_ready(y3)
    y3_ref = jnp.sum(x3.astype(jnp.float32) * w2, axis=-1) + b2[0]
    assert y3.shape == (batch3,)
    assert jnp.allclose(y3.astype(jnp.float32), y3_ref, atol=2e-2, rtol=2e-2)

    print("KERNEL_OK")
</pallas_src>

<mosaic_0001>
module attributes {stable_mosaic.version = 11 : i64} {
  func.func @_projector_kernel(%arg0: i32, %arg1: memref<8x32xf32, #tpu.memory_space<vmem>>, %arg2: memref<1x32xf32, #tpu.memory_space<vmem>>, %arg3: memref<1xf32, #tpu.memory_space<smem>>, %arg4: memref<8x1xf32, #tpu.memory_space<vmem>>) attributes {dimension_semantics = [#tpu.dimension_semantics<parallel>], iteration_bounds = array<i64: 1>, scalar_prefetch = 0 : i64, scratch_operands = 0 : i64, tpu.core_type = #tpu.core_type<tc>, window_params = [{transform_indices = @transform_0, window_bounds = array<i64: 8, 32>}, {pipeline_mode = #tpu.pipeline_mode<synchronous>, transform_indices = @transform_1, window_bounds = array<i64: 1, 32>}, {transform_indices = @transform_2, window_bounds = array<i64: 1>}, {transform_indices = @transform_3, window_bounds = array<i64: 8, 1>}]} {
    %c0 = arith.constant 0 : index
    %c0_0 = arith.constant 0 : index
    %0 = vector.load %arg1[%c0, %c0_0] : memref<8x32xf32, #tpu.memory_space<vmem>>, vector<8x32xf32>
    %c0_1 = arith.constant 0 : index
    %c0_2 = arith.constant 0 : index
    %1 = vector.load %arg2[%c0_1, %c0_2] : memref<1x32xf32, #tpu.memory_space<vmem>>, vector<1x32xf32>
    %2 = vector.broadcast %1 : vector<1x32xf32> to vector<8x32xf32>
    %3 = arith.mulf %0, %2 : vector<8x32xf32>
    %cst = arith.constant dense<0.000000e+00> : vector<8xf32>
    %4 = vector.multi_reduction <add>, %3, %cst [1] : vector<8x32xf32> to vector<8xf32>
    %5 = vector.shape_cast %4 : vector<8xf32> to vector<8x1xf32>
    %c0_3 = arith.constant 0 : index
    %6 = memref.load %arg3[%c0_3] : memref<1xf32, #tpu.memory_space<smem>>
    %7 = vector.broadcast %6 : f32 to vector<8x1xf32>
    %8 = arith.addf %5, %7 : vector<8x1xf32>
    %c0_4 = arith.constant 0 : index
    %c0_5 = arith.constant 0 : index
    %9 = vector.load %arg4[%c0_4, %c0_5] : memref<8x1xf32, #tpu.memory_space<vmem>>, vector<8x1xf32>
    tpu.vector_store %arg4[%c0_4, %c0_5], %8 {strides = array<i32>} : memref<8x1xf32, #tpu.memory_space<vmem>>, vector<8x1xf32>,
    return
  }
  func.func @transform_0(%arg0: i32) -> (i32, i32) {
    %c0_i32 = arith.constant 0 : i32
    %c0_i32_0 = arith.constant 0 : i32
    return %arg0, %c0_i32 : i32, i32
  }
  func.func @transform_1(%arg0: i32) -> (i32, i32) {
    %c0_i32 = arith.constant 0 : i32
    %c0_i32_0 = arith.constant 0 : i32
    %c0_i32_1 = arith.constant 0 : i32
    return %c0_i32, %c0_i32_0 : i32, i32
  }
  func.func @transform_2(%arg0: i32) -> i32 {
    %c0_i32 = arith.constant 0 : i32
    %c0_i32_0 = arith.constant 0 : i32
    return %c0_i32 : i32
  }
  func.func @transform_3(%arg0: i32) -> (i32, i32) {
    %c0_i32 = arith.constant 0 : i32
    %c0_i32_0 = arith.constant 0 : i32
    return %arg0, %c0_i32 : i32, i32
  }
}

</mosaic_0001>

<llo_original>
// kernel: tpu_custom_call.1
$region0: #{tpu_custom_call.1}
  #allocation0 [shape = 'u32[]', space=smem, size = 0x4, offset = 0x4, fixed_abs, tag = 'smem constant byte address 0x4 - core index']
  #allocation1 [shape = 'u32[144,128]{1,0:T(1,128)}', space=vmem, size = 0x12000, scoped, tag = 'internal scratch']
  #allocation2 [shape = 'f32[1]{0:T(128)S(6)}', space=smem, size = 0x200, scoped, tag = 'scoped memory for tpu_custom_call.1']
  %s0 = inlined_call_operand.hbm [shape: f32[8,32], index: 0, kind: input, shape index: {}]
  %s1 = inlined_call_operand.vmem [shape: f32[1,32], index: 1, kind: input, shape index: {}]
  %s2 = inlined_call_operand.<no memory space> [shape: f32[1], index: 2, kind: input, shape index: {}]
  %s3 = inlined_call_operand.vmem [shape: f32[8,1], index: 3, kind: output, shape index: {}]
  %s4 = sld [smem:[#allocation0]]
  $region26: #{tpu_custom_call.1} parent=0
    _
  %s6 = ssub.s32 1, %s4
  %s7 = scalar_select 0, %s6, %s4
  %8 = sst [smem:[#allocation2]] %s2
  $region1: #{tpu_custom_call.1} parent=0
    #allocation3 [shape = 'u8[4096]{0}', space=vmem, size = 0x1000, scoped, tag = 'input window, operand 0, single buffered']
    #allocation4 [shape = 's32[1]{0}', space=sflag, size = 0x4, scoped, tag = 'scoped memory for tpu_custom_call.1']
    %9 = vsyncpa [#allocation4], 0
    // Predicated region
    $region2: #{tpu_custom_call.1} parent=1 // pred_check
      _
    $region3: #{tpu_custom_call.1} parent=1 // pred_check_branch
      %11 = sbr.rel (0) target = $region5
    $region4: #{tpu_custom_call.1} parent=1 // pred_region
      %s13 = ssub.s32 128, 128
      %14 = vsyncadd [#allocation4], %s13
      %s16 = sshll.u32 [#allocation3], 4
      %s17 = int_to_ptr.vmem [resolvable:$true] %s16
      %19 = dma.hbm_to_vmem [thread:$0]  %s0, 128, %s17, [#allocation4]
    $region5: #{tpu_custom_call.1} parent=1 // pred_fallthru
      _
    // Predicated region
    $region6: #{tpu_custom_call.1} parent=1 // pred_check
      _
    $region7: #{tpu_custom_call.1} parent=1 // pred_check_branch
      %21 = sbr.rel (0) target = $region9
    $region8: #{tpu_custom_call.1} parent=1 // pred_region
      _
    $region9: #{tpu_custom_call.1} parent=1 // pred_fallthru
      _
    // Predicated region
    $region10: #{tpu_custom_call.1} parent=1 // pred_check
      _
    $region11: #{tpu_custom_call.1} parent=1 // pred_check_branch
      %23 = sbr.rel (0) target = $region13
    $region12: #{tpu_custom_call.1} parent=1 // pred_region
      _
    $region13: #{tpu_custom_call.1} parent=1 // pred_fallthru
      _
    // Predicated region
    $region14: #{tpu_custom_call.1} parent=1 // pred_check
      _
    $region15: #{tpu_custom_call.1} parent=1 // pred_check_branch
      %25 = sbr.rel (0) target = $region17
    $region16: #{tpu_custom_call.1} parent=1 // pred_region
      %26 = dma.done [#allocation4], 128
    $region17: #{tpu_custom_call.1} parent=1 // pred_fallthru
      _
    %v27 = vld [vmem:[#allocation3] sm:$0xff]
    %v28 = vld [vmem:[%s1] sm:$0x1]
    %v30 = vlaneseq
    %v31 = vshrl.u32 %v30, 7
    %v32 = vsub.s32 0, %v31
    %v33 = vrot.slane %v28, %v32
    %v35 = vmul.f32 %v27, %v33
    %vm36 = vcmask 261120
    %v37 = vsel %vm36, %v35, 0.0
    %38 = vadd.xlane.f32.xlu0 %v37
    %v39 = vpop.xlane.xlu0 %38
    %s40 = sld [smem:[#allocation2]]
    %v41 = vstv %s40
    %v42 = vadd.f32 %v39, %v41
    %vm43 = vcmask 7168
    %44 = vst.msk [vmem:[%s3] sm:$0xff] %vm43, %v42
    // Predicated region
    $region18: #{tpu_custom_call.1} parent=1 // pred_check
      _
    $region19: #{tpu_custom_call.1} parent=1 // pred_check_branch
      %46 = sbr.rel (0) target = $region21
    $region20: #{tpu_custom_call.1} parent=1 // pred_region
      _
    $region21: #{tpu_custom_call.1} parent=1 // pred_fallthru
      _
    // Predicated region
    $region22: #{tpu_custom_call.1} parent=1 // pred_check
      _
    $region23: #{tpu_custom_call.1} parent=1 // pred_check_branch
      %48 = sbr.rel (0) target = $region25
    $region24: #{tpu_custom_call.1} parent=1 // pred_region
      _
    $region25: #{tpu_custom_call.1} parent=1 // pred_fallthru
      _
    %49 = vsyncpa [#allocation4], 1

</llo_original>
